<compile_context>
chip_gen: v7x
topology: tpu7x:2x2x1
jax: 0.10.0
libtpu: 0.0.40
codegen_flags: <defaults>
</compile_context>

<pallas_src>
import math
import jax
import jax.numpy as jnp
from jax.experimental import pallas as pl
from jax.experimental.pallas import tpu as pltpu

LANES = 128


def _round_up(x, m):
    return (x + m - 1) // m * m


def linear_kernel(x_ref, wb_ref, o_ref):
    # x_ref : (R, group*in_dim)        packed input slab (16 batch rows / row)
    # wb_ref: (group*in_dim + 1, 128)  [ kron(I_group, W^T) ; tiled bias ]
    # o_ref : (R, 128)                 packed output slab (16 batch rows / row)
    k_in = wb_ref.shape[0] - 1
    x = x_ref[...].astype(jnp.float32)
    mat = wb_ref[0:k_in, :]                      # (k_in, 128) block-diagonal W^T
    b = wb_ref[k_in:k_in + 1, :]                 # (1, 128) tiled bias (sublane bcast)
    acc = jnp.dot(x, mat, preferred_element_type=jnp.float32) + b
    o_ref[...] = acc.astype(o_ref.dtype)


def perceptron_forward(x, weight, bias, *, tile_b=32768):
    """y = x @ weight.T + bias  (PyTorch nn.Linear forward).

    x: (B, in_dim); weight: (out_dim, in_dim) [PyTorch layout]; bias: (out_dim,).
    """
    B, in_dim = x.shape
    out_dim = weight.shape[0]
    assert LANES % out_dim == 0, "out_dim must divide 128 for lane-dense packing"
    group = LANES // out_dim                 # batch rows packed per 128-lane row (16)
    k_in = group * in_dim                    # packed input width (48 for 3 -> 8)

    # Block-diagonal weight table + tiled bias; kept float32 (tiny, VMEM-resident).
    wt = weight.astype(jnp.float32).T                                   # (in_dim, out_dim)
    mat = jnp.kron(jnp.eye(group, dtype=jnp.float32), wt)               # (k_in, 128)
    b_tiled = jnp.tile(bias.astype(jnp.float32), group).reshape(1, LANES)
    wb = jnp.concatenate([mat, b_tiled], axis=0)                        # (k_in + 1, 128)

    # Batch tiling: tiles are multiples of 8*group (=128) batch rows so the
    # packed slabs satisfy the (8, 128) constraint; pad B to a whole number of
    # tiles (padding is sliced off at the end, <= tile_rows - 1 wasted rows).
    rows_align = 8 * group
    b_min = _round_up(B, rows_align)
    tile_cap = max(_round_up(tile_b, rows_align), rows_align)
    grid_b = pl.cdiv(b_min, tile_cap)
    tile_rows = _round_up(pl.cdiv(b_min, grid_b), rows_align)
    b_pad = grid_b * tile_rows
    if b_pad != B:
        x = jnp.pad(x, ((0, b_pad - B), (0, 0)))
    r = tile_rows // group                    # sublane rows per grid step (>= 8)

    # Free, contiguous row-major reshape: lane-dense(-ish) input slab.
    xg = x.reshape(b_pad // group, k_in)

    out = pl.pallas_call(
        linear_kernel,
        out_shape=jax.ShapeDtypeStruct((b_pad // group, LANES), x.dtype),
        grid_spec=pltpu.PrefetchScalarGridSpec(
            num_scalar_prefetch=0,
            grid=(grid_b,),
            in_specs=[
                # packed x: stream tile_rows batch rows per step (contiguous HBM).
                pl.BlockSpec((r, k_in), lambda i: (i, 0)),
                # [kron(I, W^T); bias]: constant index_map -> stays resident in VMEM.
                pl.BlockSpec((k_in + 1, LANES), lambda i: (0, 0)),
            ],
            # packed output: full-width 128-lane stores, dense VMEM->HBM DMA.
            out_specs=pl.BlockSpec((r, LANES), lambda i: (i, 0)),
        ),
        compiler_params=pltpu.CompilerParams(
            # Batch rows are independent -> parallel (2-TC sharding on v7x).
            dimension_semantics=("parallel",),
            vmem_limit_bytes=32 * 1024 * 1024),
    )(xg, wb)

    # Free reshape back to (B, out_dim); drop the padded rows.
    return out.reshape(b_pad, out_dim)[:B, :]


def init_linear_params(key, in_dim, out_dim, dtype=jnp.float32):
    # Mimic PyTorch nn.Linear default init: U(-1/sqrt(in_dim), 1/sqrt(in_dim)).
    kw, kb = jax.random.split(key)
    bound = 1.0 / math.sqrt(in_dim)
    weight = jax.random.uniform(kw, (out_dim, in_dim), dtype, -bound, bound)
    bias = jax.random.uniform(kb, (out_dim,), dtype, -bound, bound)
    return weight, bias


if __name__ == "__main__":
    input_dim, output_dim = 3, 8

    key = jax.random.PRNGKey(0)
    kx, kp, kx2 = jax.random.split(key, 3)
    weight, bias = init_linear_params(kp, input_dim, output_dim)

    # Small batch: single grid step (padded 64 -> 128 rows internally).
    batch = 64
    x = jax.random.normal(kx, (batch, input_dim), jnp.float32)
    out = jax.block_until_ready(perceptron_forward(x, weight, bias))
    ref = x @ weight.T + bias
    assert out.shape == (batch, output_dim)
    assert jnp.allclose(out, ref, atol=1e-5), "mismatch vs reference (single block)"

    # Larger batch that is not a multiple of 16, with a small tile: exercises
    # the batch grid, internal padding, and the multi-step "parallel" path.
    batch2 = 1000
    x2 = jax.random.normal(kx2, (batch2, input_dim), jnp.float32)
    out2 = jax.block_until_ready(perceptron_forward(x2, weight, bias, tile_b=256))
    ref2 = x2 @ weight.T + bias
    assert out2.shape == (batch2, output_dim)
    assert jnp.allclose(out2, ref2, atol=1e-5), "mismatch vs reference (gridded)"

    print("KERNEL_OK")
</pallas_src>

<mosaic_0001>
module attributes {stable_mosaic.version = 11 : i64} {
  func.func @linear_kernel(%arg0: i32, %arg1: memref<8x48xf32, #tpu.memory_space<vmem>>, %arg2: memref<49x128xf32, #tpu.memory_space<vmem>>, %arg3: memref<8x128xf32, #tpu.memory_space<vmem>>) attributes {dimension_semantics = [#tpu.dimension_semantics<parallel>], iteration_bounds = array<i64: 1>, scalar_prefetch = 0 : i64, scratch_operands = 0 : i64, tpu.core_type = #tpu.core_type<tc>, window_params = [{transform_indices = @transform_0, window_bounds = array<i64: 8, 48>}, {pipeline_mode = #tpu.pipeline_mode<synchronous>, transform_indices = @transform_1, window_bounds = array<i64: 49, 128>}, {transform_indices = @transform_2, window_bounds = array<i64: 8, 128>}]} {
    %c0 = arith.constant 0 : index
    %c0_0 = arith.constant 0 : index
    %0 = vector.load %arg1[%c0, %c0_0] : memref<8x48xf32, #tpu.memory_space<vmem>>, vector<8x48xf32>
    %c0_1 = arith.constant 0 : index
    %c0_2 = arith.constant 0 : index
    %1 = vector.load %arg2[%c0_1, %c0_2] : memref<49x128xf32, #tpu.memory_space<vmem>>, vector<48x128xf32>
    %c48 = arith.constant 48 : index
    %c0_3 = arith.constant 0 : index
    %2 = vector.load %arg2[%c48, %c0_3] : memref<49x128xf32, #tpu.memory_space<vmem>>, vector<1x128xf32>
    %cst = arith.constant dense<0.000000e+00> : vector<8x128xf32>
    %3 = tpu.matmul %0, %1, %cst {dimension_numbers = #tpu.dot_dimension_numbers<[1], [0], [0], [1], [0, 0, 1, 1], [], []>} : vector<8x48xf32>, vector<48x128xf32>, vector<8x128xf32> -> vector<8x128xf32>
    %4 = vector.broadcast %2 : vector<1x128xf32> to vector<8x128xf32>
    %5 = arith.addf %3, %4 : vector<8x128xf32>
    %c0_4 = arith.constant 0 : index
    %c0_5 = arith.constant 0 : index
    %6 = vector.load %arg3[%c0_4, %c0_5] : memref<8x128xf32, #tpu.memory_space<vmem>>, vector<8x128xf32>
    tpu.vector_store %arg3[%c0_4, %c0_5], %5 {strides = array<i32>} : memref<8x128xf32, #tpu.memory_space<vmem>>, vector<8x128xf32>,
    return
  }
  func.func @transform_0(%arg0: i32) -> (i32, i32) {
    %c0_i32 = arith.constant 0 : i32
    %c0_i32_0 = arith.constant 0 : i32
    return %arg0, %c0_i32 : i32, i32
  }
  func.func @transform_1(%arg0: i32) -> (i32, i32) {
    %c0_i32 = arith.constant 0 : i32
    %c0_i32_0 = arith.constant 0 : i32
    %c0_i32_1 = arith.constant 0 : i32
    return %c0_i32, %c0_i32_0 : i32, i32
  }
  func.func @transform_2(%arg0: i32) -> (i32, i32) {
    %c0_i32 = arith.constant 0 : i32
    %c0_i32_0 = arith.constant 0 : i32
    return %arg0, %c0_i32 : i32, i32
  }
}

</mosaic_0001>

<llo_original>
// kernel: tpu_custom_call.1
$region0: #{tpu_custom_call.1}
  #allocation0 [shape = 'u32[]', space=smem, size = 0x4, offset = 0x4, fixed_abs, tag = 'smem constant byte address 0x4 - core index']
  #allocation1 [shape = 'u32[144,128]{1,0:T(1,128)}', space=vmem, size = 0x12000, scoped, tag = 'internal scratch']
  %s0 = inlined_call_operand.hbm [shape: f32[8,48], index: 0, kind: input, shape index: {}]
  %s1 = inlined_call_operand.hbm [shape: f32[49,128], index: 1, kind: input, shape index: {}]
  %s2 = inlined_call_operand.hbm [shape: f32[8,128], index: 2, kind: output, shape index: {}]
  %s3 = sld [smem:[#allocation0]]
  $region26: #{tpu_custom_call.1} parent=0
    _
  %s5 = ssub.s32 1, %s3
  %s6 = scalar_select 0, %s5, %s3
  $region1: #{tpu_custom_call.1} parent=0
    #allocation2 [shape = 'u8[4096]{0}', space=vmem, size = 0x1000, scoped, tag = 'input window, operand 0, single buffered']
    #allocation3 [shape = 's32[1]{0}', space=sflag, size = 0x4, scoped, tag = 'scoped memory for tpu_custom_call.1']
    #allocation4 [shape = 's32[1]{0}', space=sflag, size = 0x4, scoped, tag = 'scoped memory for tpu_custom_call.1']
    #allocation5 [shape = 'u8[28672]{0}', space=vmem, size = 0x7000, scoped, tag = 'input window, operand 1, single buffered']
    #allocation6 [shape = 's32[1]{0}', space=sflag, size = 0x4, scoped, tag = 'scoped memory for tpu_custom_call.1']
    #allocation7 [shape = 'u8[4096]{0}', space=vmem, size = 0x1000, scoped, tag = 'output window, operand 0, single buffered']
    %7 = vsyncpa [#allocation3], 0
    %8 = vsyncpa [#allocation6], 0
    %9 = vsyncpa [#allocation4], 0
    // Predicated region
    $region2: #{tpu_custom_call.1} parent=1 // pred_check
      _
    $region3: #{tpu_custom_call.1} parent=1 // pred_check_branch
      %11 = sbr.rel (0) target = $region5
    $region4: #{tpu_custom_call.1} parent=1 // pred_region
      %s13 = ssub.s32 128, 128
      %14 = vsyncadd [#allocation3], %s13
      %s16 = sshll.u32 [#allocation2], 4
      %s17 = int_to_ptr.vmem [resolvable:$true] %s16
      %19 = dma.hbm_to_vmem [thread:$0]  %s0, 128, %s17, [#allocation3]
    $region5: #{tpu_custom_call.1} parent=1 // pred_fallthru
      _
    // Predicated region
    $region6: #{tpu_custom_call.1} parent=1 // pred_check
      _
    $region7: #{tpu_custom_call.1} parent=1 // pred_check_branch
      %21 = sbr.rel (0) target = $region9
    $region8: #{tpu_custom_call.1} parent=1 // pred_region
      %s23 = ssub.s32 896, 896
      %24 = vsyncadd [#allocation6], %s23
      %s25 = sshll.u32 [#allocation5], 4
      %s26 = int_to_ptr.vmem [resolvable:$true] %s25
      %31 = dma.hbm_to_vmem [thread:$0]  %s1, 896, %s26, [#allocation6], 128, 128, 8
    $region9: #{tpu_custom_call.1} parent=1 // pred_fallthru
      _
    // Predicated region
    $region10: #{tpu_custom_call.1} parent=1 // pred_check
      _
    $region11: #{tpu_custom_call.1} parent=1 // pred_check_branch
      %33 = sbr.rel (0) target = $region13
    $region12: #{tpu_custom_call.1} parent=1 // pred_region
      %34 = dma.done [#allocation3], 128
    $region13: #{tpu_custom_call.1} parent=1 // pred_fallthru
      _
    // Predicated region
    $region14: #{tpu_custom_call.1} parent=1 // pred_check
      _
    $region15: #{tpu_custom_call.1} parent=1 // pred_check_branch
      %36 = sbr.rel (0) target = $region17
    $region16: #{tpu_custom_call.1} parent=1 // pred_region
      %37 = dma.done [#allocation6], 896
    $region17: #{tpu_custom_call.1} parent=1 // pred_fallthru
      _
    %v38 = vld [vmem:[#allocation2] sm:$0xff]
    %v39 = vld [vmem:[#allocation5] sm:$0xff]
    %v40 = vld [vmem:[#allocation5 + $0x8] sm:$0xff]
    %v41 = vld [vmem:[#allocation5 + $0x10] sm:$0xff]
    %v42 = vld [vmem:[#allocation5 + $0x18] sm:$0xff]
    %v43 = vld [vmem:[#allocation5 + $0x20] sm:$0xff]
    %v44 = vld [vmem:[#allocation5 + $0x28] sm:$0xff]
    %v45 = vld [vmem:[#allocation5 + $0x30] sm:$0x1]
    %v46 = vlaneseq
    %v47 = vshrl.u32 %v46, 7
    %v48 = vsub.s32 0, %v47
    %v49 = vrot.slane %v45, %v48
    %vm50 = vcmask 392192
    %v52 = vsel %vm50, %v38, 0
    %54 = vmatprep.subr.mxu0 0.0
    %55 = vmatpush1.msra.mxu0 %v39
    %56 = vmatprep.subr.mxu0 0.0
    %57 = vmatpush1.msra.mxu0 %v40
    %58 = vmatprep.subr.mxu0 0.0
    %59 = vmatpush1.msra.mxu0 %v41
    %60 = vmatprep.subr.mxu0 0.0
    %61 = vmatpush1.msra.mxu0 %v42
    %62 = vmatprep.subr.mxu0 0.0
    %63 = vmatpush1.msra.mxu0 %v43
    %64 = vmatprep.subr.mxu0 0.0
    %65 = vmatpush1.msra.mxu0 %v44
    %66 = vmatprep.subr.mxu0 0.0
    %67 = vmatpush1.msra.mxu0 0.0
    %68 = vmatprep.subr.mxu0 0.0
    %69 = vmatpush1.msra.mxu0 0.0
    %70 = vmatprep.subr.mxu0 0.0
    %71 = vmatpush1.msra.mxu0 0.0
    %72 = vmatprep.subr.mxu0 0.0
    %73 = vmatpush1.msra.mxu0 0.0
    %74 = vmatprep.subr.mxu0 0.0
    %75 = vmatpush1.msra.mxu0 0.0
    %76 = vmatprep.subr.mxu0 0.0
    %77 = vmatpush1.msra.mxu0 0.0
    %78 = vmatprep.subr.mxu0 0.0
    %79 = vmatpush1.msra.mxu0 0.0
    %80 = vmatprep.subr.mxu0 0.0
    %81 = vmatpush1.msra.mxu0 0.0
    %82 = vmatprep.subr.mxu0 0.0
    %83 = vmatpush1.msra.mxu0 0.0
    %84 = vmatprep.subr.mxu0 0.0
    %85 = vmatpush1.msra.mxu0 0.0
    %86 = vmatprep.subr.mxu0 0.0
    %87 = vmatpush1.msra.mxu0 0.0
    %88 = vmatprep.subr.mxu0 0.0
    %89 = vmatpush1.msra.mxu0 0.0
    %90 = vmatprep.subr.mxu0 0.0
    %91 = vmatpush1.msra.mxu0 0.0
    %92 = vmatprep.subr.mxu0 0.0
    %93 = vmatpush1.msra.mxu0 0.0
    %94 = vmatprep.subr.mxu0 0.0
    %95 = vmatpush1.msra.mxu0 0.0
    %96 = vmatprep.subr.mxu0 0.0
    %97 = vmatpush1.msra.mxu0 0.0
    %98 = vmatprep.subr.mxu0 0.0
    %99 = vmatpush1.msra.mxu0 0.0
    %100 = vmatprep.subr.mxu0 0.0
    %101 = vmatpush1.msra.mxu0 0.0
    %102 = vmatprep.subr.mxu0 0.0
    %103 = vmatpush1.msra.mxu0 0.0
    %104 = vmatprep.subr.mxu0 0.0
    %105 = vmatpush1.msra.mxu0 0.0
    %106 = vmatprep.subr.mxu0 0.0
    %107 = vmatpush1.msra.mxu0 0.0
    %108 = vmatprep.subr.mxu0 0.0
    %109 = vmatpush1.msra.mxu0 0.0
    %110 = vmatprep.subr.mxu0 0.0
    %111 = vmatpush1.msra.mxu0 0.0
    %112 = vmatprep.subr.mxu0 0.0
    %113 = vmatpush1.msra.mxu0 0.0
    %114 = vmatprep.subr.mxu0 0.0
    %115 = vmatpush1.msra.mxu0 0.0
    %116 = vmatprep.subr.mxu0 0.0
    %117 = vmatpush1.msra.mxu0 0.0
    %118 = vmatprep.mubr.f32.mxu0 0.0
    %119 = vmatmul.mubr.f32.gmra.mrb[0].mxu0 %v52
    %v120 = vpop.f32.mrb[0].mxu0
    %v121 = vadd.f32 %v49, %v120
    %v122 = vpop.f32.mrb[0].mxu0
    %123 = vdwg.mxu0
    %124 = vst [vmem:[#allocation7] sm:$0xff] %v121
    // Predicated region
    $region18: #{tpu_custom_call.1} parent=1 // pred_check
      _
    $region19: #{tpu_custom_call.1} parent=1 // pred_check_branch
      %126 = sbr.rel (0) target = $region21
    $region20: #{tpu_custom_call.1} parent=1 // pred_region
      %s128 = ssub.s32 128, 128
      %129 = vsyncadd [#allocation4], %s128
      %s131 = sshll.u32 [#allocation7], 4
      %s132 = int_to_ptr.vmem [resolvable:$true] %s131
      %134 = dma.vmem_to_hbm [thread:$0]  %s132, 128, %s2, [#allocation4]
    $region21: #{tpu_custom_call.1} parent=1 // pred_fallthru
      _
    // Predicated region
    $region22: #{tpu_custom_call.1} parent=1 // pred_check
      _
    $region23: #{tpu_custom_call.1} parent=1 // pred_check_branch
      %136 = sbr.rel (0) target = $region25
    $region24: #{tpu_custom_call.1} parent=1 // pred_region
      %137 = dma.done [#allocation4], 128
    $region25: #{tpu_custom_call.1} parent=1 // pred_fallthru
      _
    %138 = vsyncpa [#allocation3], 1
    %139 = vsyncpa [#allocation6], 1
    %140 = vsyncpa [#allocation4], 1

</llo_original>
